<compile_context>
chip_gen: v6e
topology: v6e:2x2x1
jax: 0.10.0
libtpu: 0.0.40
codegen_flags: <defaults>
</compile_context>

<pallas_src>
import functools

import jax
import jax.numpy as jnp
import numpy as np
from jax.experimental import pallas as pl
from jax.experimental.pallas import tpu as pltpu

LANE = 128
SUBLANE = 8


def _round_up(x, m):
    return (x + m - 1) // m * m


def _pad2(x, rows, cols):
    r, c = x.shape
    return jnp.pad(x, ((0, rows - r), (0, cols - c)))


# ----------------------------------------------------------------------------
# Fused single-call path (small N): encoder + pool + z_bias + decoder.
# ----------------------------------------------------------------------------
def _fused_kernel(x_ref, w1e_ref, b1e_ref, w2e_ref, b2e_ref,
                  w1dz_ref, b1d_ref, w1ds_ref, w2d_ref, b2d_ref, out_ref,
                  *, n_rows):
    x = x_ref[...]                                                # (Np, K1p)
    h1 = jnp.maximum(
        jnp.dot(x, w1e_ref[...], preferred_element_type=jnp.float32)
        + b1e_ref[...], 0.0)                                      # (Np, Hp) f32
    rows = jax.lax.broadcasted_iota(jnp.int32, (x.shape[0], 1), 0)
    h1_mean = jnp.sum(jnp.where(rows < n_rows, h1, 0.0), axis=0,
                      keepdims=True) * (1.0 / n_rows)             # (1, Hp)
    z = (jnp.dot(h1_mean.astype(w2e_ref.dtype), w2e_ref[...],
                 preferred_element_type=jnp.float32)
         + b2e_ref[...])                                          # (1, Zp)
    zb = (jnp.dot(z.astype(w1dz_ref.dtype), w1dz_ref[...],
                  preferred_element_type=jnp.float32)
          + b1d_ref[...])                                         # (1, Hp)
    h2 = jnp.maximum(
        jnp.dot(x, w1ds_ref[...], preferred_element_type=jnp.float32) + zb,
        0.0)                                                      # (Np, Hp)
    out_ref[...] = (
        jnp.dot(h2.astype(w2d_ref.dtype), w2d_ref[...],
                preferred_element_type=jnp.float32)
        + b2d_ref[...])                                           # (Np, DAp)


# ----------------------------------------------------------------------------
# Phase 1 (large N): encoder layer 1 + masked row-sum of h1; finalize does the
# pooled (1,Hp)@(Hp,Zp) matmul and folds z into the decoder layer-1 bias.
# ----------------------------------------------------------------------------
def _encoder_kernel(x_ref, w1e_ref, b1e_ref, w2e_ref, b2e_ref,
                    w1dz_ref, b1d_ref, zb_ref, acc_ref, *, tile_m, n_rows):
    i = pl.program_id(0)

    @pl.when(i == 0)
    def _():
        acc_ref[...] = jnp.zeros_like(acc_ref)

    x = x_ref[...]                                                # (tm, K1p)
    h1 = jnp.maximum(
        jnp.dot(x, w1e_ref[...], preferred_element_type=jnp.float32)
        + b1e_ref[...], 0.0)                                      # (tm, Hp) f32
    rows = i * tile_m + jax.lax.broadcasted_iota(jnp.int32, (tile_m, 1), 0)
    acc_ref[...] += jnp.sum(jnp.where(rows < n_rows, h1, 0.0), axis=0,
                            keepdims=True)                        # (1, Hp)

    @pl.when(i == pl.num_programs(0) - 1)
    def _():
        h1_mean = acc_ref[...] * (1.0 / n_rows)                   # mean-pool
        z = (jnp.dot(h1_mean.astype(w2e_ref.dtype), w2e_ref[...],
                     preferred_element_type=jnp.float32)
             + b2e_ref[...])                                      # (1, Zp)
        zb_ref[...] = (
            jnp.dot(z.astype(w1dz_ref.dtype), w1dz_ref[...],
                    preferred_element_type=jnp.float32)
            + b1d_ref[...])                                       # (1, Hp)


# ----------------------------------------------------------------------------
# Phase 2 (large N): decoder per row tile; latent enters only via z_bias.
# Streams the SAME padded cat(s, a) array as phase 1 (zero weight rows for a).
# ----------------------------------------------------------------------------
def _decoder_kernel(x_ref, zb_ref, w1ds_ref, w2d_ref, b2d_ref, out_ref):
    h2 = jnp.maximum(
        jnp.dot(x_ref[...], w1ds_ref[...], preferred_element_type=jnp.float32)
        + zb_ref[...], 0.0)                                       # (tm, Hp)
    out_ref[...] = (
        jnp.dot(h2.astype(w2d_ref.dtype), w2d_ref[...],
                preferred_element_type=jnp.float32)
        + b2d_ref[...])                                           # (tm, DAp)


def encoder_decoder_forward(s, a, params, *, tile_m=1024, small_n_fused=512,
                            stream_dtype=jnp.float32,
                            vmem_limit_bytes=48 * 1024 * 1024):
    """Fused Encoder_Decoder forward. s: (N, ds), a: (N, da) -> (N, da)."""
    N, ds = s.shape
    da = a.shape[1]
    H = params["w2e"].shape[0]
    Z = params["w2e"].shape[1]

    f32 = jnp.float32
    sd = stream_dtype
    sd_b = int(np.dtype(sd).itemsize)

    # Lane-dense (128-aligned) feature dims.
    K1p = _round_up(ds + da, LANE)
    Hp = _round_up(H, LANE)
    Zp = _round_up(Z, LANE)
    DAp = _round_up(da, LANE)

    # Zero-padded weights (padded lanes / rows contribute exactly zero).
    w1e = _pad2(params["w1e"], K1p, Hp).astype(sd)
    b1e = _pad2(params["b1e"], 1, Hp).astype(f32)
    w2e = _pad2(params["w2e"], Hp, Zp).astype(sd)
    b2e = _pad2(params["b2e"], 1, Zp).astype(f32)
    w1d_z = _pad2(params["w1d_z"], Zp, Hp).astype(sd)
    b1d = _pad2(params["b1d"], 1, Hp).astype(f32)
    # Decoder layer-1 weight laid out over the full cat(s, a) K slot: rows for
    # the `a` columns (and lane padding) are zero so the decoder can reuse the
    # encoder's streamed input.
    w1d_sk = _pad2(params["w1d_s"], K1p, Hp).astype(sd)
    w2d = _pad2(params["w2d"], Hp, DAp).astype(sd)
    b2d = _pad2(params["b2d"], 1, DAp).astype(f32)

    # ------------------------- small-N fused fast path ----------------------
    if N <= small_n_fused:
        Np = _round_up(N, SUBLANE)
        x = _pad2(jnp.concatenate([s, a], axis=1), Np, K1p).astype(sd)
        flops = 2 * Np * (K1p * Hp + K1p * Hp + Hp * DAp) + 2 * Hp * Zp + 2 * Zp * Hp
        bytes_acc = (Np * K1p * sd_b
                     + (2 * K1p * Hp + Hp * Zp + Zp * Hp + Hp * DAp) * sd_b
                     + (3 * Hp + Zp + DAp) * 4 + Np * DAp * 4)
        out_pad = pl.pallas_call(
            functools.partial(_fused_kernel, n_rows=N),
            out_shape=jax.ShapeDtypeStruct((Np, DAp), f32),
            compiler_params=pltpu.CompilerParams(
                vmem_limit_bytes=vmem_limit_bytes),
            cost_estimate=pl.CostEstimate(flops=flops, transcendentals=0,
                                          bytes_accessed=bytes_acc),
        )(x, w1e, b1e, w2e, b2e, w1d_z, b1d, w1d_sk, w2d, b2d)
        return out_pad[:N, :da]

    # ------------------------- large-N two-phase path -----------------------
    # Cap the tile so the grid always has >= 2 tiles (v7x megacore sharding).
    tm = min(tile_m, _round_up(pl.cdiv(N, 2), SUBLANE))
    num_tiles = pl.cdiv(N, tm)
    Np = num_tiles * tm

    x = _pad2(jnp.concatenate([s, a], axis=1), Np, K1p).astype(sd)

    def resident(shape):  # VMEM-resident across all grid steps
        return pl.BlockSpec(shape, lambda i: (0,) * len(shape))

    # ----- phase 1: encoder layer 1 + pooled h1 -> z_bias -----
    enc_flops = 2 * Np * K1p * Hp + 2 * Hp * Zp + 2 * Zp * Hp
    enc_bytes = (Np * K1p * sd_b + (K1p * Hp + Hp * Zp + Zp * Hp) * sd_b
                 + (3 * Hp + Zp) * 4 + Hp * 4)
    z_bias = pl.pallas_call(
        functools.partial(_encoder_kernel, tile_m=tm, n_rows=N),
        out_shape=jax.ShapeDtypeStruct((1, Hp), f32),
        grid_spec=pltpu.PrefetchScalarGridSpec(
            num_scalar_prefetch=0,
            grid=(num_tiles,),
            in_specs=[
                pl.BlockSpec((tm, K1p), lambda i: (i, 0)),   # streamed rows
                resident((K1p, Hp)),                         # w1e
                resident((1, Hp)),                           # b1e
                resident((Hp, Zp)),                          # w2e (finalize only)
                resident((1, Zp)),                           # b2e (finalize only)
                resident((Zp, Hp)),                          # w1d_z (finalize only)
                resident((1, Hp)),                           # b1d (finalize only)
            ],
            out_specs=pl.BlockSpec((1, Hp), lambda i: (0, 0)),
            scratch_shapes=[pltpu.VMEM((1, Hp), jnp.float32)],
        ),
        compiler_params=pltpu.CompilerParams(
            dimension_semantics=("arbitrary",),
            vmem_limit_bytes=vmem_limit_bytes),
        cost_estimate=pl.CostEstimate(flops=enc_flops, transcendentals=0,
                                      bytes_accessed=enc_bytes),
    )(x, w1e, b1e, w2e, b2e, w1d_z, b1d)

    # ----- phase 2: decoder per row tile (parallel) -----
    dec_flops = 2 * Np * (K1p * Hp + Hp * DAp)
    dec_bytes = (Np * K1p * sd_b + (K1p * Hp + Hp * DAp) * sd_b
                 + (Hp + DAp) * 4 + Np * DAp * 4)
    out_pad = pl.pallas_call(
        _decoder_kernel,
        out_shape=jax.ShapeDtypeStruct((Np, DAp), f32),
        grid_spec=pltpu.PrefetchScalarGridSpec(
            num_scalar_prefetch=0,
            grid=(num_tiles,),
            in_specs=[
                pl.BlockSpec((tm, K1p), lambda i: (i, 0)),   # same stream as phase 1
                resident((1, Hp)),                           # z_bias
                resident((K1p, Hp)),                         # w1d over K1p slot
                resident((Hp, DAp)),                         # w2d
                resident((1, DAp)),                          # b2d
            ],
            out_specs=pl.BlockSpec((tm, DAp), lambda i: (i, 0)),
        ),
        compiler_params=pltpu.CompilerParams(
            dimension_semantics=("parallel",),
            vmem_limit_bytes=vmem_limit_bytes),
        cost_estimate=pl.CostEstimate(flops=dec_flops, transcendentals=0,
                                      bytes_accessed=dec_bytes),
    )(x, z_bias, w1d_sk, w2d, b2d)

    return out_pad[:N, :da]


# ----------------------------------------------------------------------------
# Parameters & pure-JAX reference (mirrors PyTorch forward semantics).
# ----------------------------------------------------------------------------
def make_params(key, ds, da, hidden, z_dim):
    ks = jax.random.split(key, 4)

    def lin(k, fan_in, fan_out):
        bound = 1.0 / jnp.sqrt(fan_in)
        kw, kb = jax.random.split(k)
        w = jax.random.uniform(kw, (fan_in, fan_out), jnp.float32, -bound, bound)
        b = jax.random.uniform(kb, (1, fan_out), jnp.float32, -bound, bound)
        return w, b

    w1e, b1e = lin(ks[0], ds + da, hidden)          # encoder layer 1 (fused cat)
    w2e, b2e = lin(ks[1], hidden, z_dim)            # encoder layer 2
    w1d, b1d = lin(ks[2], ds + z_dim, hidden)       # decoder layer 1 (split)
    w2d, b2d = lin(ks[3], hidden, da)               # decoder layer 2

    return {
        "w1e": w1e, "b1e": b1e,
        "w2e": w2e, "b2e": b2e,
        "w1d_s": w1d[:ds], "w1d_z": w1d[ds:], "b1d": b1d,
        "w2d": w2d, "b2d": b2d,
    }


def reference_forward(s, a, p):
    x = jnp.concatenate([s, a], axis=1)
    h = jnp.maximum(x @ p["w1e"] + p["b1e"], 0.0)
    z = h @ p["w2e"] + p["b2e"]
    z = jnp.mean(z, axis=0, keepdims=True)                  # pooled latent
    z_rep = jnp.tile(z, (s.shape[0], 1))                    # z.repeat(len(s), 1)
    x2 = jnp.concatenate([s, z_rep], axis=1)                # cat((s, x), 1)
    w1d = jnp.concatenate([p["w1d_s"], p["w1d_z"]], axis=0)
    h2 = jnp.maximum(x2 @ w1d + p["b1d"], 0.0)
    return h2 @ p["w2d"] + p["b2d"]


if __name__ == "__main__":
    DS, DA, H, Z = 16, 4, 32, 16

    key = jax.random.PRNGKey(0)
    k_s, k_a, k_p, k_s2, k_a2 = jax.random.split(key, 5)
    params = make_params(k_p, DS, DA, H, Z)

    # 1) Small-N fused fast path (single pallas_call), strict f32 check.
    N = 8
    s = jax.random.normal(k_s, (N, DS), jnp.float32)
    a = jax.random.normal(k_a, (N, DA), jnp.float32)
    out = jax.block_until_ready(encoder_decoder_forward(s, a, params))
    ref = reference_forward(s, a, params)
    assert out.shape == (N, DA)
    assert jnp.allclose(out, ref, atol=1e-4, rtol=1e-4), (
        float(jnp.max(jnp.abs(out - ref))))

    # 2) Larger-N two-phase gridded path (>=2 row tiles), strict f32 check.
    N2 = 1234
    s2 = jax.random.normal(k_s2, (N2, DS), jnp.float32)
    a2 = jax.random.normal(k_a2, (N2, DA), jnp.float32)
    out2 = jax.block_until_ready(encoder_decoder_forward(s2, a2, params))
    ref2 = reference_forward(s2, a2, params)
    assert out2.shape == (N2, DA)
    assert jnp.allclose(out2, ref2, atol=1e-3, rtol=1e-3), (
        float(jnp.max(jnp.abs(out2 - ref2))))

    # 3) bf16-streamed variant (halves HBM read traffic); loose tolerance.
    out3 = jax.block_until_ready(
        encoder_decoder_forward(s2, a2, params, stream_dtype=jnp.bfloat16))
    assert jnp.allclose(out3, ref2, atol=2e-1, rtol=2e-1), (
        float(jnp.max(jnp.abs(out3 - ref2))))

    print("KERNEL_OK")
</pallas_src>

<mosaic_0001>
module attributes {stable_mosaic.version = 11 : i64} {
  func.func @_fused_kernel(%arg0: memref<8x128xf32, #tpu.memory_space<vmem>>, %arg1: memref<128x128xf32, #tpu.memory_space<vmem>>, %arg2: memref<1x128xf32, #tpu.memory_space<vmem>>, %arg3: memref<128x128xf32, #tpu.memory_space<vmem>>, %arg4: memref<1x128xf32, #tpu.memory_space<vmem>>, %arg5: memref<128x128xf32, #tpu.memory_space<vmem>>, %arg6: memref<1x128xf32, #tpu.memory_space<vmem>>, %arg7: memref<128x128xf32, #tpu.memory_space<vmem>>, %arg8: memref<128x128xf32, #tpu.memory_space<vmem>>, %arg9: memref<1x128xf32, #tpu.memory_space<vmem>>, %arg10: memref<8x128xf32, #tpu.memory_space<vmem>>) attributes {dimension_semantics = [], scalar_prefetch = 0 : i64, scratch_operands = 0 : i64, tpu.core_type = #tpu.core_type<tc>} {
    %c0 = arith.constant 0 : index
    %c0_0 = arith.constant 0 : index
    %0 = vector.load %arg0[%c0, %c0_0] : memref<8x128xf32, #tpu.memory_space<vmem>>, vector<8x128xf32>
    %c0_1 = arith.constant 0 : index
    %c0_2 = arith.constant 0 : index
    %1 = vector.load %arg1[%c0_1, %c0_2] : memref<128x128xf32, #tpu.memory_space<vmem>>, vector<128x128xf32>
    %cst = arith.constant dense<0.000000e+00> : vector<8x128xf32>
    %2 = tpu.matmul %0, %1, %cst {dimension_numbers = #tpu.dot_dimension_numbers<[1], [0], [0], [1], [0, 0, 1, 1], [], []>} : vector<8x128xf32>, vector<128x128xf32>, vector<8x128xf32> -> vector<8x128xf32>
    %c0_3 = arith.constant 0 : index
    %c0_4 = arith.constant 0 : index
    %3 = vector.load %arg2[%c0_3, %c0_4] : memref<1x128xf32, #tpu.memory_space<vmem>>, vector<1x128xf32>
    %4 = vector.broadcast %3 : vector<1x128xf32> to vector<8x128xf32>
    %5 = arith.addf %2, %4 : vector<8x128xf32>
    %cst_5 = arith.constant 0.000000e+00 : f32
    %6 = vector.broadcast %cst_5 : f32 to vector<8x128xf32>
    %7 = arith.maximumf %5, %6 : vector<8x128xf32>
    %8 = tpu.iota {dimensions = array<i32: 0>} : vector<8x1xi32>
    %c8_i32 = arith.constant 8 : i32
    %9 = vector.broadcast %c8_i32 : i32 to vector<8x1xi32>
    %10 = arith.cmpi slt, %8, %9 : vector<8x1xi32>
    %cst_6 = arith.constant 0.000000e+00 : f32
    %11 = vector.shape_cast %10 : vector<8x1xi1> to vector<8x1xi1>
    %12 = vector.broadcast %11 : vector<8x1xi1> to vector<8x128xi1>
    %13 = vector.broadcast %cst_6 : f32 to vector<8x128xf32>
    %14 = arith.select %12, %7, %13 : vector<8x128xi1>, vector<8x128xf32>
    %cst_7 = arith.constant dense<0.000000e+00> : vector<128xf32>
    %15 = vector.multi_reduction <add>, %14, %cst_7 [0] : vector<8x128xf32> to vector<128xf32>
    %16 = vector.shape_cast %15 : vector<128xf32> to vector<1x128xf32>
    %cst_8 = arith.constant 1.250000e-01 : f32
    %17 = vector.broadcast %cst_8 : f32 to vector<1x128xf32>
    %18 = arith.mulf %16, %17 : vector<1x128xf32>
    %c0_9 = arith.constant 0 : index
    %c0_10 = arith.constant 0 : index
    %19 = vector.load %arg3[%c0_9, %c0_10] : memref<128x128xf32, #tpu.memory_space<vmem>>, vector<128x128xf32>
    %cst_11 = arith.constant dense<0.000000e+00> : vector<1x128xf32>
    %20 = tpu.matmul %18, %19, %cst_11 {dimension_numbers = #tpu.dot_dimension_numbers<[1], [0], [0], [1], [0, 0, 1, 1], [], []>} : vector<1x128xf32>, vector<128x128xf32>, vector<1x128xf32> -> vector<1x128xf32>
    %c0_12 = arith.constant 0 : index
    %c0_13 = arith.constant 0 : index
    %21 = vector.load %arg4[%c0_12, %c0_13] : memref<1x128xf32, #tpu.memory_space<vmem>>, vector<1x128xf32>
    %22 = arith.addf %20, %21 : vector<1x128xf32>
    %c0_14 = arith.constant 0 : index
    %c0_15 = arith.constant 0 : index
    %23 = vector.load %arg5[%c0_14, %c0_15] : memref<128x128xf32, #tpu.memory_space<vmem>>, vector<128x128xf32>
    %cst_16 = arith.constant dense<0.000000e+00> : vector<1x128xf32>
    %24 = tpu.matmul %22, %23, %cst_16 {dimension_numbers = #tpu.dot_dimension_numbers<[1], [0], [0], [1], [0, 0, 1, 1], [], []>} : vector<1x128xf32>, vector<128x128xf32>, vector<1x128xf32> -> vector<1x128xf32>
    %c0_17 = arith.constant 0 : index
    %c0_18 = arith.constant 0 : index
    %25 = vector.load %arg6[%c0_17, %c0_18] : memref<1x128xf32, #tpu.memory_space<vmem>>, vector<1x128xf32>
    %26 = arith.addf %24, %25 : vector<1x128xf32>
    %c0_19 = arith.constant 0 : index
    %c0_20 = arith.constant 0 : index
    %27 = vector.load %arg7[%c0_19, %c0_20] : memref<128x128xf32, #tpu.memory_space<vmem>>, vector<128x128xf32>
    %cst_21 = arith.constant dense<0.000000e+00> : vector<8x128xf32>
    %28 = tpu.matmul %0, %27, %cst_21 {dimension_numbers = #tpu.dot_dimension_numbers<[1], [0], [0], [1], [0, 0, 1, 1], [], []>} : vector<8x128xf32>, vector<128x128xf32>, vector<8x128xf32> -> vector<8x128xf32>
    %29 = vector.broadcast %26 : vector<1x128xf32> to vector<8x128xf32>
    %30 = arith.addf %28, %29 : vector<8x128xf32>
    %cst_22 = arith.constant 0.000000e+00 : f32
    %31 = vector.broadcast %cst_22 : f32 to vector<8x128xf32>
    %32 = arith.maximumf %30, %31 : vector<8x128xf32>
    %c0_23 = arith.constant 0 : index
    %c0_24 = arith.constant 0 : index
    %33 = vector.load %arg8[%c0_23, %c0_24] : memref<128x128xf32, #tpu.memory_space<vmem>>, vector<128x128xf32>
    %cst_25 = arith.constant dense<0.000000e+00> : vector<8x128xf32>
    %34 = tpu.matmul %32, %33, %cst_25 {dimension_numbers = #tpu.dot_dimension_numbers<[1], [0], [0], [1], [0, 0, 1, 1], [], []>} : vector<8x128xf32>, vector<128x128xf32>, vector<8x128xf32> -> vector<8x128xf32>
    %c0_26 = arith.constant 0 : index
    %c0_27 = arith.constant 0 : index
    %35 = vector.load %arg9[%c0_26, %c0_27] : memref<1x128xf32, #tpu.memory_space<vmem>>, vector<1x128xf32>
    %36 = vector.broadcast %35 : vector<1x128xf32> to vector<8x128xf32>
    %37 = arith.addf %34, %36 : vector<8x128xf32>
    %c0_28 = arith.constant 0 : index
    %c0_29 = arith.constant 0 : index
    %38 = vector.load %arg10[%c0_28, %c0_29] : memref<8x128xf32, #tpu.memory_space<vmem>>, vector<8x128xf32>
    tpu.vector_store %arg10[%c0_28, %c0_29], %37 {strides = array<i32>} : memref<8x128xf32, #tpu.memory_space<vmem>>, vector<8x128xf32>,
    return
  }
}

</mosaic_0001>

<llo_original>
// kernel: tpu_custom_call.1
$region0: #{tpu_custom_call.1}
  #allocation0 [shape = 'u32[]', space=smem, size = 0x4, offset = 0x4, fixed_abs, tag = 'smem constant byte address 0x4 - core index']
  #allocation1 [shape = 'u32[144,128]{1,0:T(1,128)}', space=vmem, size = 0x12000, scoped, tag = 'internal scratch']
  %s0 = inlined_call_operand.hbm [shape: f32[8,128], index: 0, kind: input, shape index: {}]
  %s1 = inlined_call_operand.hbm [shape: f32[128,128], index: 1, kind: input, shape index: {}]
  %s2 = inlined_call_operand.vmem [shape: f32[1,128], index: 2, kind: input, shape index: {}]
  %s3 = inlined_call_operand.hbm [shape: f32[128,128], index: 3, kind: input, shape index: {}]
  %s4 = inlined_call_operand.vmem [shape: f32[1,128], index: 4, kind: input, shape index: {}]
  %s5 = inlined_call_operand.hbm [shape: f32[128,128], index: 5, kind: input, shape index: {}]
  %s6 = inlined_call_operand.vmem [shape: f32[1,128], index: 6, kind: input, shape index: {}]
  %s7 = inlined_call_operand.hbm [shape: f32[128,128], index: 7, kind: input, shape index: {}]
  %s8 = inlined_call_operand.hbm [shape: f32[128,128], index: 8, kind: input, shape index: {}]
  %s9 = inlined_call_operand.vmem [shape: f32[1,128], index: 9, kind: input, shape index: {}]
  %s10 = inlined_call_operand.hbm [shape: f32[8,128], index: 10, kind: output, shape index: {}]
  %s11 = sld [smem:[#allocation0]]
  $region74: #{tpu_custom_call.1} parent=0
    _
  %s13 = ssub.s32 1, %s11
  %s14 = scalar_select 0, %s13, %s11
  $region1: #{tpu_custom_call.1} parent=0
    #allocation2 [shape = 'u8[4096]{0}', space=vmem, size = 0x1000, scoped, tag = 'input window, operand 0, single buffered']
    #allocation3 [shape = 's32[1]{0}', space=sflag, size = 0x4, scoped, tag = 'scoped memory for tpu_custom_call.1']
    #allocation4 [shape = 's32[1]{0}', space=sflag, size = 0x4, scoped, tag = 'scoped memory for tpu_custom_call.1']
    #allocation5 [shape = 'u8[65536]{0}', space=vmem, size = 0x10000, scoped, tag = 'input window, operand 1, single buffered']
    #allocation6 [shape = 's32[1]{0}', space=sflag, size = 0x4, scoped, tag = 'scoped memory for tpu_custom_call.1']
    #allocation7 [shape = 'u8[65536]{0}', space=vmem, size = 0x10000, scoped, tag = 'input window, operand 3, single buffered']
    #allocation8 [shape = 'u8[65536]{0}', space=vmem, size = 0x10000, scoped, tag = 'input window, operand 5, single buffered']
    #allocation9 [shape = 's32[1]{0}', space=sflag, size = 0x4, scoped, tag = 'scoped memory for tpu_custom_call.1']
    #allocation10 [shape = 'u8[65536]{0}', space=vmem, size = 0x10000, scoped, tag = 'input window, operand 7, single buffered']
    #allocation11 [shape = 'u8[65536]{0}', space=vmem, size = 0x10000, scoped, tag = 'input window, operand 8, single buffered']
    #allocation12 [shape = 's32[1]{0}', space=sflag, size = 0x4, scoped, tag = 'scoped memory for tpu_custom_call.1']
    #allocation13 [shape = 'u8[4096]{0}', space=vmem, size = 0x1000, scoped, tag = 'output window, operand 0, single buffered']
    %15 = vsyncpa [#allocation3], 0
    %16 = vsyncpa [#allocation6], 0
    %17 = vsyncpa [#allocation9], 0
    %18 = vsyncpa [#allocation12], 0
    %19 = vsyncpa [#allocation4], 0
    // Predicated region
    $region2: #{tpu_custom_call.1} parent=1 // pred_check
      _
    $region3: #{tpu_custom_call.1} parent=1 // pred_check_branch
      %21 = sbr.rel (0) target = $region5
    $region4: #{tpu_custom_call.1} parent=1 // pred_region
      %s23 = ssub.s32 128, 128
      %24 = vsyncadd [#allocation3], %s23
      %s26 = sshll.u32 [#allocation2], 4
      %s27 = int_to_ptr.vmem [resolvable:$true] %s26
      %29 = dma.hbm_to_vmem [thread:$0]  %s0, 128, %s27, [#allocation3]
    $region5: #{tpu_custom_call.1} parent=1 // pred_fallthru
      _
    // Predicated region
    $region6: #{tpu_custom_call.1} parent=1 // pred_check
      _
    $region7: #{tpu_custom_call.1} parent=1 // pred_check_branch
      %31 = sbr.rel (0) target = $region9
    $region8: #{tpu_custom_call.1} parent=1 // pred_region
      %s33 = ssub.s32 2048, 2048
      %34 = vsyncadd [#allocation6], %s33
      %s35 = sshll.u32 [#allocation5], 4
      %s36 = int_to_ptr.vmem [resolvable:$true] %s35
      %41 = dma.hbm_to_vmem [thread:$0]  %s1, 2048, %s36, [#allocation6], 128, 128, 8
    $region9: #{tpu_custom_call.1} parent=1 // pred_fallthru
      _
    // Predicated region
    $region10: #{tpu_custom_call.1} parent=1 // pred_check
      _
    $region11: #{tpu_custom_call.1} parent=1 // pred_check_branch
      %43 = sbr.rel (0) target = $region13
    $region12: #{tpu_custom_call.1} parent=1 // pred_region
      _
    $region13: #{tpu_custom_call.1} parent=1 // pred_fallthru
      _
    // Predicated region
    $region14: #{tpu_custom_call.1} parent=1 // pred_check
      _
    $region15: #{tpu_custom_call.1} parent=1 // pred_check_branch
      %45 = sbr.rel (0) target = $region17
    $region16: #{tpu_custom_call.1} parent=1 // pred_region
      %s47 = ssub.s32 2048, 2048
      %48 = vsyncadd [#allocation6], %s47
      %s49 = sshll.u32 [#allocation7], 4
      %s50 = int_to_ptr.vmem [resolvable:$true] %s49
      %55 = dma.hbm_to_vmem [thread:$0]  %s3, 2048, %s50, [#allocation6], 128, 128, 8
    $region17: #{tpu_custom_call.1} parent=1 // pred_fallthru
      _
    // Predicated region
    $region18: #{tpu_custom_call.1} parent=1 // pred_check
      _
    $region19: #{tpu_custom_call.1} parent=1 // pred_check_branch
      %57 = sbr.rel (0) target = $region21
    $region20: #{tpu_custom_call.1} parent=1 // pred_region
      _
    $region21: #{tpu_custom_call.1} parent=1 // pred_fallthru
      _
    // Predicated region
    $region22: #{tpu_custom_call.1} parent=1 // pred_check
      _
    $region23: #{tpu_custom_call.1} parent=1 // pred_check_branch
      %59 = sbr.rel (0) target = $region25
    $region24: #{tpu_custom_call.1} parent=1 // pred_region
      %s61 = ssub.s32 2048, 2048
      %62 = vsyncadd [#allocation9], %s61
      %s63 = sshll.u32 [#allocation8], 4
      %s64 = int_to_ptr.vmem [resolvable:$true] %s63
      %69 = dma.hbm_to_vmem [thread:$0]  %s5, 2048, %s64, [#allocation9], 128, 128, 8
    $region25: #{tpu_custom_call.1} parent=1 // pred_fallthru
      _
    // Predicated region
    $region26: #{tpu_custom_call.1} parent=1 // pred_check
      _
    $region27: #{tpu_custom_call.1} parent=1 // pred_check_branch
      %71 = sbr.rel (0) target = $region29
    $region28: #{tpu_custom_call.1} parent=1 // pred_region
      _
    $region29: #{tpu_custom_call.1} parent=1 // pred_fallthru
      _
    // Predicated region
    $region30: #{tpu_custom_call.1} parent=1 // pred_check
      _
    $region31: #{tpu_custom_call.1} parent=1 // pred_check_branch
      %73 = sbr.rel (0) target = $region33
    $region32: #{tpu_custom_call.1} parent=1 // pred_region
      %s75 = ssub.s32 2048, 2048
      %76 = vsyncadd [#allocation9], %s75
      %s77 = sshll.u32 [#allocation10], 4
      %s78 = int_to_ptr.vmem [resolvable:$true] %s77
      %83 = dma.hbm_to_vmem [thread:$0]  %s7, 2048, %s78, [#allocation9], 128, 128, 8
    $region33: #{tpu_custom_call.1} parent=1 // pred_fallthru
      _
    // Predicated region
    $region34: #{tpu_custom_call.1} parent=1 // pred_check
      _
    $region35: #{tpu_custom_call.1} parent=1 // pred_check_branch
      %85 = sbr.rel (0) target = $region37
    $region36: #{tpu_custom_call.1} parent=1 // pred_region
      %s87 = ssub.s32 2048, 2048
      %88 = vsyncadd [#allocation12], %s87
      %s89 = sshll.u32 [#allocation11], 4
      %s90 = int_to_ptr.vmem [resolvable:$true] %s89
      %95 = dma.hbm_to_vmem [thread:$0]  %s8, 2048, %s90, [#allocation12], 128, 128, 8
    $region37: #{tpu_custom_call.1} parent=1 // pred_fallthru
      _
    // Predicated region
    $region38: #{tpu_custom_call.1} parent=1 // pred_check
      _
    $region39: #{tpu_custom_call.1} parent=1 // pred_check_branch
      %97 = sbr.rel (0) target = $region41
    $region40: #{tpu_custom_call.1} parent=1 // pred_region
      _
    $region41: #{tpu_custom_call.1} parent=1 // pred_fallthru
      _
    // Predicated region
    $region42: #{tpu_custom_call.1} parent=1 // pred_check
      _
    $region43: #{tpu_custom_call.1} parent=1 // pred_check_branch
      %99 = sbr.rel (0) target = $region45
    $region44: #{tpu_custom_call.1} parent=1 // pred_region
      %100 = dma.done [#allocation3], 128
    $region45: #{tpu_custom_call.1} parent=1 // pred_fallthru
      _
    // Predicated region
    $region46: #{tpu_custom_call.1} parent=1 // pred_check
      _
    $region47: #{tpu_custom_call.1} parent=1 // pred_check_branch
      %102 = sbr.rel (0) target = $region49
    $region48: #{tpu_custom_call.1} parent=1 // pred_region
      %103 = dma.done [#allocation6], 2048
    $region49: #{tpu_custom_call.1} parent=1 // pred_fallthru
      _
    // Predicated region
    $region50: #{tpu_custom_call.1} parent=1 // pred_check
      _
    $region51: #{tpu_custom_call.1} parent=1 // pred_check_branch
      %105 = sbr.rel (0) target = $region53
    $region52: #{tpu_custom_call.1} parent=1 // pred_region
      %106 = dma.done [#allocation6], 2048
    $region53: #{tpu_custom_call.1} parent=1 // pred_fallthru
      _
    // Predicated region
    $region54: #{tpu_custom_call.1} parent=1 // pred_check
      _
    $region55: #{tpu_custom_call.1} parent=1 // pred_check_branch
      %108 = sbr.rel (0) target = $region57
    $region56: #{tpu_custom_call.1} parent=1 // pred_region
      %109 = dma.done [#allocation9], 2048
    $region57: #{tpu_custom_call.1} parent=1 // pred_fallthru
      _
    // Predicated region
    $region58: #{tpu_custom_call.1} parent=1 // pred_check
      _
    $region59: #{tpu_custom_call.1} parent=1 // pred_check_branch
      %111 = sbr.rel (0) target = $region61
    $region60: #{tpu_custom_call.1} parent=1 // pred_region
      %112 = dma.done [#allocation9], 2048
    $region61: #{tpu_custom_call.1} parent=1 // pred_fallthru
      _
    // Predicated region
    $region62: #{tpu_custom_call.1} parent=1 // pred_check
      _
    $region63: #{tpu_custom_call.1} parent=1 // pred_check_branch
      %114 = sbr.rel (0) target = $region65
    $region64: #{tpu_custom_call.1} parent=1 // pred_region
      %115 = dma.done [#allocation12], 2048
    $region65: #{tpu_custom_call.1} parent=1 // pred_fallthru
      _
    %v116 = vld [vmem:[#allocation2] sm:$0xff]
    %v117 = vld [vmem:[#allocation5] sm:$0xff]
    %v118 = vld [vmem:[#allocation5 + $0x8] sm:$0xff]
    %v119 = vld [vmem:[#allocation5 + $0x10] sm:$0xff]
    %v120 = vld [vmem:[#allocation5 + $0x18] sm:$0xff]
    %v121 = vld [vmem:[#allocation5 + $0x20] sm:$0xff]
    %v122 = vld [vmem:[#allocation5 + $0x28] sm:$0xff]
    %v123 = vld [vmem:[#allocation5 + $0x30] sm:$0xff]
    %v124 = vld [vmem:[#allocation5 + $0x38] sm:$0xff]
    %v125 = vld [vmem:[#allocation5 + $0x40] sm:$0xff]
    %v126 = vld [vmem:[#allocation5 + $0x48] sm:$0xff]
    %v127 = vld [vmem:[#allocation5 + $0x50] sm:$0xff]
    %v128 = vld [vmem:[#allocation5 + $0x58] sm:$0xff]
    %v129 = vld [vmem:[#allocation5 + $0x60] sm:$0xff]
    %v130 = vld [vmem:[#allocation5 + $0x68] sm:$0xff]
    %v131 = vld [vmem:[#allocation5 + $0x70] sm:$0xff]
    %v132 = vld [vmem:[#allocation5 + $0x78] sm:$0xff]
    %v133 = vld [vmem:[%s2] sm:$0x1]
    %v135 = vlaneseq
    %v136 = vshrl.u32 %v135, 7
    %v137 = vsub.s32 0, %v136
    %v138 = vrot.slane %v133, %v137
    %140 = vmatprep.subr.mxu0 0.0
    %141 = vmatpush1.msra.mxu0 %v132
    %142 = vmatprep.subr.mxu0 0.0
    %143 = vmatpush1.msra.mxu0 %v131
    %144 = vmatprep.subr.mxu0 0.0
    %145 = vmatpush1.msra.mxu0 %v130
    %146 = vmatprep.subr.mxu0 0.0
    %147 = vmatpush1.msra.mxu0 %v129
    %148 = vmatprep.subr.mxu0 0.0
    %149 = vmatpush1.msra.mxu0 %v128
    %150 = vmatprep.subr.mxu0 0.0
    %151 = vmatpush1.msra.mxu0 %v127
    %152 = vmatprep.subr.mxu0 0.0
    %153 = vmatpush1.msra.mxu0 %v126
    %154 = vmatprep.subr.mxu0 0.0
    %155 = vmatpush1.msra.mxu0 %v125
    %156 = vmatprep.subr.mxu0 0.0
    %157 = vmatpush1.msra.mxu0 %v124
    %158 = vmatprep.subr.mxu0 0.0
    %159 = vmatpush1.msra.mxu0 %v123
    %160 = vmatprep.subr.mxu0 0.0
    %161 = vmatpush1.msra.mxu0 %v122
    %162 = vmatprep.subr.mxu0 0.0
    %163 = vmatpush1.msra.mxu0 %v121
    %164 = vmatprep.subr.mxu0 0.0
    %165 = vmatpush1.msra.mxu0 %v120
    %166 = vmatprep.subr.mxu0 0.0
    %167 = vmatpush1.msra.mxu0 %v119
    %168 = vmatprep.subr.mxu0 0.0
    %169 = vmatpush1.msra.mxu0 %v118
    %170 = vmatprep.subr.mxu0 0.0
    %171 = vmatpush1.msra.mxu0 %v117
    %172 = vmatprep.subr.mxu0 0.0
    %173 = vmatpush2.msra.mxu0 0.0
    %174 = vmatprep.subr.mxu0 0.0
    %175 = vmatpush2.msra.mxu0 0.0
    %176 = vmatprep.subr.mxu0 0.0
    %177 = vmatpush2.msra.mxu0 0.0
    %178 = vmatprep.subr.mxu0 0.0
    %179 = vmatpush2.msra.mxu0 0.0
    %180 = vmatprep.subr.mxu0 0.0
    %181 = vmatpush2.msra.mxu0 0.0
    %182 = vmatprep.subr.mxu0 0.0
    %183 = vmatpush2.msra.mxu0 0.0
    %184 = vmatprep.subr.mxu0 0.0
    %185 = vmatpush2.msra.mxu0 0.0
    %186 = vmatprep.subr.mxu0 0.0
    %187 = vmatpush2.msra.mxu0 0.0
    %188 = vmatprep.subr.mxu0 0.0
    %189 = vmatpush2.msra.mxu0 0.0
    %190 = vmatprep.subr.mxu0 0.0
    %191 = vmatpush2.msra.mxu0 0.0
    %192 = vmatprep.subr.mxu0 0.0
    %193 = vmatpush2.msra.mxu0 0.0
    %194 = vmatprep.subr.mxu0 0.0
    %195 = vmatpush2.msra.mxu0 0.0
    %196 = vmatprep.subr.mxu0 0.0
    %197 = vmatpush2.msra.mxu0 0.0
    %198 = vmatprep.subr.mxu0 0.0
    %199 = vmatpush2.msra.mxu0 0.0
    %200 = vmatprep.subr.mxu0 0.0
    %201 = vmatpush2.msra.mxu0 0.0
    %202 = vmatprep.subr.mxu0 0.0
    %203 = vmatpush2.msra.mxu0 0.0
    %204 = vmatprep.mubr.f32.mxu0 0.0
    %205 = vmatmul.mubr.f32.gmra.mxu0 %v116
    %v206 = vpop.f32.mrf.mxu0
    %v207 = vadd.f32 %v138, %v206
    %v208 = vpop.f32.mrf.mxu0
    %209 = vdwg.mxu0
    %v210 = vmax.f32 %v207, 0.0
    %v211 = vlaneseq
    %v212 = vshrl.u32 %v211, 7
    %vm213 = vcmp.lt.s32.totalorder %v212, 8
    %v214 = vsel %vm213, 1, 0
    %vm215 = vcmp.eq.s32.totalorder %v214, 1
    %v216 = vsel %vm215, %v210, 0.0
    %v217 = vrot.slane %v216, 4
    %v218 = vadd.f32 %v216, %v217
    %v219 = vrot.slane %v218, 2
    %v220 = vadd.f32 %v218, %v219
    %v221 = vrot.slane %v220, 1
    %v222 = vadd.f32 %v220, %v221
    %v223 = vmul.f32 %v222, 0.125
    %v224 = vld [vmem:[#allocation7] sm:$0xff]
    %v225 = vld [vmem:[#allocation7 + $0x8] sm:$0xff]
    %v226 = vld [vmem:[#allocation7 + $0x10] sm:$0xff]
    %v227 = vld [vmem:[#allocation7 + $0x18] sm:$0xff]
    %v228 = vld [vmem:[#allocation7 + $0x20] sm:$0xff]
    %v229 = vld [vmem:[#allocation7 + $0x28] sm:$0xff]
    %v230 = vld [vmem:[#allocation7 + $0x30] sm:$0xff]
    %v231 = vld [vmem:[#allocation7 + $0x38] sm:$0xff]
    %v232 = vld [vmem:[#allocation7 + $0x40] sm:$0xff]
    %v233 = vld [vmem:[#allocation7 + $0x48] sm:$0xff]
    %v234 = vld [vmem:[#allocation7 + $0x50] sm:$0xff]
    %v235 = vld [vmem:[#allocation7 + $0x58] sm:$0xff]
    %v236 = vld [vmem:[#allocation7 + $0x60] sm:$0xff]
    %v237 = vld [vmem:[#allocation7 + $0x68] sm:$0xff]
    %v238 = vld [vmem:[#allocation7 + $0x70] sm:$0xff]
    %v239 = vld [vmem:[#allocation7 + $0x78] sm:$0xff]
    %v240 = vld [vmem:[%s4] sm:$0x1]
    %241 = vmatprep.subr.mxu0 0.0
    %242 = vmatpush1.msra.mxu0 %v239
    %243 = vmatprep.subr.mxu0 0.0
    %244 = vmatpush1.msra.mxu0 %v238
    %245 = vmatprep.subr.mxu0 0.0
    %246 = vmatpush1.msra.mxu0 %v237
    %247 = vmatprep.subr.mxu0 0.0
    %248 = vmatpush1.msra.mxu0 %v236
    %249 = vmatprep.subr.mxu0 0.0
    %250 = vmatpush1.msra.mxu0 %v235
    %251 = vmatprep.subr.mxu0 0.0
    %252 = vmatpush1.msra.mxu0 %v234
    %253 = vmatprep.subr.mxu0 0.0
    %254 = vmatpush1.msra.mxu0 %v233
    %255 = vmatprep.subr.mxu0 0.0
    %256 = vmatpush1.msra.mxu0 %v232
    %257 = vmatprep.subr.mxu0 0.0
    %258 = vmatpush1.msra.mxu0 %v231
    %259 = vmatprep.subr.mxu0 0.0
    %260 = vmatpush1.msra.mxu0 %v230
    %261 = vmatprep.subr.mxu0 0.0
    %262 = vmatpush1.msra.mxu0 %v229
    %263 = vmatprep.subr.mxu0 0.0
    %264 = vmatpush1.msra.mxu0 %v228
    %265 = vmatprep.subr.mxu0 0.0
    %266 = vmatpush1.msra.mxu0 %v227
    %267 = vmatprep.subr.mxu0 0.0
    %268 = vmatpush1.msra.mxu0 %v226
    %269 = vmatprep.subr.mxu0 0.0
    %270 = vmatpush1.msra.mxu0 %v225
    %271 = vmatprep.subr.mxu0 0.0
    %272 = vmatpush1.msra.mxu0 %v224
    %273 = vmatprep.subr.mxu0 0.0
    %274 = vmatpush2.msra.mxu0 0.0
    %275 = vmatprep.subr.mxu0 0.0
    %276 = vmatpush2.msra.mxu0 0.0
    %277 = vmatprep.subr.mxu0 0.0
    %278 = vmatpush2.msra.mxu0 0.0
    %279 = vmatprep.subr.mxu0 0.0
    %280 = vmatpush2.msra.mxu0 0.0
    %281 = vmatprep.subr.mxu0 0.0
    %282 = vmatpush2.msra.mxu0 0.0
    %283 = vmatprep.subr.mxu0 0.0
    %284 = vmatpush2.msra.mxu0 0.0
    %285 = vmatprep.subr.mxu0 0.0
    %286 = vmatpush2.msra.mxu0 0.0
    %287 = vmatprep.subr.mxu0 0.0
    %288 = vmatpush2.msra.mxu0 0.0
    %289 = vmatprep.subr.mxu0 0.0
    %290 = vmatpush2.msra.mxu0 0.0
    %291 = vmatprep.subr.mxu0 0.0
    %292 = vmatpush2.msra.mxu0 0.0
    %293 = vmatprep.subr.mxu0 0.0
    %294 = vmatpush2.msra.mxu0 0.0
    %295 = vmatprep.subr.mxu0 0.0
    %296 = vmatpush2.msra.mxu0 0.0
    %297 = vmatprep.subr.mxu0 0.0
    %298 = vmatpush2.msra.mxu0 0.0
    %299 = vmatprep.subr.mxu0 0.0
    %300 = vmatpush2.msra.mxu0 0.0
    %301 = vmatprep.subr.mxu0 0.0
    %302 = vmatpush2.msra.mxu0 0.0
    %303 = vmatprep.subr.mxu0 0.0
    %304 = vmatpush2.msra.mxu0 0.0
    %305 = vmatprep.mubr.f32.mxu0 0.0
    %306 = vmatmul.mubr.f32.gmra.mxu0 %v223
    %v307 = vpop.f32.mrf.mxu0
    %v308 = vadd.f32 %v240, %v307
    %v309 = vpop.f32.mrf.mxu0
    %310 = vdwg.mxu0
    %v311 = vld [vmem:[#allocation8] sm:$0xff]
    %v312 = vld [vmem:[#allocation8 + $0x8] sm:$0xff]
    %v313 = vld [vmem:[#allocation8 + $0x10] sm:$0xff]
    %v314 = vld [vmem:[#allocation8 + $0x18] sm:$0xff]
    %v315 = vld [vmem:[#allocation8 + $0x20] sm:$0xff]
    %v316 = vld [vmem:[#allocation8 + $0x28] sm:$0xff]
    %v317 = vld [vmem:[#allocation8 + $0x30] sm:$0xff]
    %v318 = vld [vmem:[#allocation8 + $0x38] sm:$0xff]
    %v319 = vld [vmem:[#allocation8 + $0x40] sm:$0xff]
    %v320 = vld [vmem:[#allocation8 + $0x48] sm:$0xff]
    %v321 = vld [vmem:[#allocation8 + $0x50] sm:$0xff]
    %v322 = vld [vmem:[#allocation8 + $0x58] sm:$0xff]
    %v323 = vld [vmem:[#allocation8 + $0x60] sm:$0xff]
    %v324 = vld [vmem:[#allocation8 + $0x68] sm:$0xff]
    %v325 = vld [vmem:[#allocation8 + $0x70] sm:$0xff]
    %v326 = vld [vmem:[#allocation8 + $0x78] sm:$0xff]
    %v327 = vld [vmem:[%s6] sm:$0x1]
    %328 = vmatprep.subr.mxu0 0.0
    %329 = vmatpush1.msra.mxu0 %v326
    %330 = vmatprep.subr.mxu0 0.0
    %331 = vmatpush1.msra.mxu0 %v325
    %332 = vmatprep.subr.mxu0 0.0
    %333 = vmatpush1.msra.mxu0 %v324
    %334 = vmatprep.subr.mxu0 0.0
    %335 = vmatpush1.msra.mxu0 %v323
    %336 = vmatprep.subr.mxu0 0.0
    %337 = vmatpush1.msra.mxu0 %v322
    %338 = vmatprep.subr.mxu0 0.0
    %339 = vmatpush1.msra.mxu0 %v321
    %340 = vmatprep.subr.mxu0 0.0
    %341 = vmatpush1.msra.mxu0 %v320
    %342 = vmatprep.subr.mxu0 0.0
    %343 = vmatpush1.msra.mxu0 %v319
    %344 = vmatprep.subr.mxu0 0.0
    %345 = vmatpush1.msra.mxu0 %v318
    %346 = vmatprep.subr.mxu0 0.0
    %347 = vmatpush1.msra.mxu0 %v317
    %348 = vmatprep.subr.mxu0 0.0
    %349 = vmatpush1.msra.mxu0 %v316
    %350 = vmatprep.subr.mxu0 0.0
    %351 = vmatpush1.msra.mxu0 %v315
    %352 = vmatprep.subr.mxu0 0.0
    %353 = vmatpush1.msra.mxu0 %v314
    %354 = vmatprep.subr.mxu0 0.0
    %355 = vmatpush1.msra.mxu0 %v313
    %356 = vmatprep.subr.mxu0 0.0
    %357 = vmatpush1.msra.mxu0 %v312
    %358 = vmatprep.subr.mxu0 0.0
    %359 = vmatpush1.msra.mxu0 %v311
    %360 = vmatprep.subr.mxu0 0.0
    %361 = vmatpush2.msra.mxu0 0.0
    %362 = vmatprep.subr.mxu0 0.0
    %363 = vmatpush2.msra.mxu0 0.0
    %364 = vmatprep.subr.mxu0 0.0
    %365 = vmatpush2.msra.mxu0 0.0
    %366 = vmatprep.subr.mxu0 0.0
    %367 = vmatpush2.msra.mxu0 0.0
    %368 = vmatprep.subr.mxu0 0.0
    %369 = vmatpush2.msra.mxu0 0.0
    %370 = vmatprep.subr.mxu0 0.0
    %371 = vmatpush2.msra.mxu0 0.0
    %372 = vmatprep.subr.mxu0 0.0
    %373 = vmatpush2.msra.mxu0 0.0
    %374 = vmatprep.subr.mxu0 0.0
    %375 = vmatpush2.msra.mxu0 0.0
    %376 = vmatprep.subr.mxu0 0.0
    %377 = vmatpush2.msra.mxu0 0.0
    %378 = vmatprep.subr.mxu0 0.0
    %379 = vmatpush2.msra.mxu0 0.0
    %380 = vmatprep.subr.mxu0 0.0
    %381 = vmatpush2.msra.mxu0 0.0
    %382 = vmatprep.subr.mxu0 0.0
    %383 = vmatpush2.msra.mxu0 0.0
    %384 = vmatprep.subr.mxu0 0.0
    %385 = vmatpush2.msra.mxu0 0.0
    %386 = vmatprep.subr.mxu0 0.0
    %387 = vmatpush2.msra.mxu0 0.0
    %388 = vmatprep.subr.mxu0 0.0
    %389 = vmatpush2.msra.mxu0 0.0
    %390 = vmatprep.subr.mxu0 0.0
    %391 = vmatpush2.msra.mxu0 0.0
    %392 = vmatprep.mubr.f32.mxu0 0.0
    %393 = vmatmul.mubr.f32.gmra.mxu0 %v308
    %v394 = vpop.f32.mrf.mxu0
    %v395 = vadd.f32 %v327, %v394
    %v396 = vpop.f32.mrf.mxu0
    %397 = vdwg.mxu0
    %v398 = vld [vmem:[#allocation10] sm:$0xff]
    %v399 = vld [vmem:[#allocation10 + $0x8] sm:$0xff]
    %v400 = vld [vmem:[#allocation10 + $0x10] sm:$0xff]
    %v401 = vld [vmem:[#allocation10 + $0x18] sm:$0xff]
    %v402 = vld [vmem:[#allocation10 + $0x20] sm:$0xff]
    %v403 = vld [vmem:[#allocation10 + $0x28] sm:$0xff]
    %v404 = vld [vmem:[#allocation10 + $0x30] sm:$0xff]
    %v405 = vld [vmem:[#allocation10 + $0x38] sm:$0xff]
    %v406 = vld [vmem:[#allocation10 + $0x40] sm:$0xff]
    %v407 = vld [vmem:[#allocation10 + $0x48] sm:$0xff]
    %v408 = vld [vmem:[#allocation10 + $0x50] sm:$0xff]
    %v409 = vld [vmem:[#allocation10 + $0x58] sm:$0xff]
    %v410 = vld [vmem:[#allocation10 + $0x60] sm:$0xff]
    %v411 = vld [vmem:[#allocation10 + $0x68] sm:$0xff]
    %v412 = vld [vmem:[#allocation10 + $0x70] sm:$0xff]
    %v413 = vld [vmem:[#allocation10 + $0x78] sm:$0xff]
    %v414 = vlaneseq
    %v415 = vshrl.u32 %v414, 7
    %v416 = vsub.s32 0, %v415
    %v417 = vrot.slane %v395, %v416
    %418 = vmatprep.subr.mxu0 0.0
    %419 = vmatpush1.msra.mxu0 %v413
    %420 = vmatprep.subr.mxu0 0.0
    %421 = vmatpush1.msra.mxu0 %v412
    %422 = vmatprep.subr.mxu0 0.0
    %423 = vmatpush1.msra.mxu0 %v411
    %424 = vmatprep.subr.mxu0 0.0
    %425 = vmatpush1.msra.mxu0 %v410
    %426 = vmatprep.subr.mxu0 0.0
    %427 = vmatpush1.msra.mxu0 %v409
    %428 = vmatprep.subr.mxu0 0.0
    %429 = vmatpush1.msra.mxu0 %v408
    %430 = vmatprep.subr.mxu0 0.0
    %431 = vmatpush1.msra.mxu0 %v407
    %432 = vmatprep.subr.mxu0 0.0
    %433 = vmatpush1.msra.mxu0 %v406
    %434 = vmatprep.subr.mxu0 0.0
    %435 = vmatpush1.msra.mxu0 %v405
    %436 = vmatprep.subr.mxu0 0.0
    %437 = vmatpush1.msra.mxu0 %v404
    %438 = vmatprep.subr.mxu0 0.0
    %439 = vmatpush1.msra.mxu0 %v403
    %440 = vmatprep.subr.mxu0 0.0
    %441 = vmatpush1.msra.mxu0 %v402
    %442 = vmatprep.subr.mxu0 0.0
    %443 = vmatpush1.msra.mxu0 %v401
    %444 = vmatprep.subr.mxu0 0.0
    %445 = vmatpush1.msra.mxu0 %v400
    %446 = vmatprep.subr.mxu0 0.0
    %447 = vmatpush1.msra.mxu0 %v399
    %448 = vmatprep.subr.mxu0 0.0
    %449 = vmatpush1.msra.mxu0 %v398
    %450 = vmatprep.subr.mxu0 0.0
    %451 = vmatpush2.msra.mxu0 0.0
    %452 = vmatprep.subr.mxu0 0.0
    %453 = vmatpush2.msra.mxu0 0.0
    %454 = vmatprep.subr.mxu0 0.0
    %455 = vmatpush2.msra.mxu0 0.0
    %456 = vmatprep.subr.mxu0 0.0
    %457 = vmatpush2.msra.mxu0 0.0
    %458 = vmatprep.subr.mxu0 0.0
    %459 = vmatpush2.msra.mxu0 0.0
    %460 = vmatprep.subr.mxu0 0.0
    %461 = vmatpush2.msra.mxu0 0.0
    %462 = vmatprep.subr.mxu0 0.0
    %463 = vmatpush2.msra.mxu0 0.0
    %464 = vmatprep.subr.mxu0 0.0
    %465 = vmatpush2.msra.mxu0 0.0
    %466 = vmatprep.subr.mxu0 0.0
    %467 = vmatpush2.msra.mxu0 0.0
    %468 = vmatprep.subr.mxu0 0.0
    %469 = vmatpush2.msra.mxu0 0.0
    %470 = vmatprep.subr.mxu0 0.0
    %471 = vmatpush2.msra.mxu0 0.0
    %472 = vmatprep.subr.mxu0 0.0
    %473 = vmatpush2.msra.mxu0 0.0
    %474 = vmatprep.subr.mxu0 0.0
    %475 = vmatpush2.msra.mxu0 0.0
    %476 = vmatprep.subr.mxu0 0.0
    %477 = vmatpush2.msra.mxu0 0.0
    %478 = vmatprep.subr.mxu0 0.0
    %479 = vmatpush2.msra.mxu0 0.0
    %480 = vmatprep.subr.mxu0 0.0
    %481 = vmatpush2.msra.mxu0 0.0
    %482 = vmatprep.mubr.f32.mxu0 0.0
    %483 = vmatmul.mubr.f32.gmra.mxu0 %v116
    %v484 = vpop.f32.mrf.mxu0
    %v485 = vadd.f32 %v417, %v484
    %v486 = vpop.f32.mrf.mxu0
    %487 = vdwg.mxu0
    %v488 = vmax.f32 %v485, 0.0
    %v489 = vld [vmem:[#allocation11] sm:$0xff]
    %v490 = vld [vmem:[#allocation11 + $0x8] sm:$0xff]
    %v491 = vld [vmem:[#allocation11 + $0x10] sm:$0xff]
    %v492 = vld [vmem:[#allocation11 + $0x18] sm:$0xff]
    %v493 = vld [vmem:[#allocation11 + $0x20] sm:$0xff]
    %v494 = vld [vmem:[#allocation11 + $0x28] sm:$0xff]
    %v495 = vld [vmem:[#allocation11 + $0x30] sm:$0xff]
    %v496 = vld [vmem:[#allocation11 + $0x38] sm:$0xff]
    %v497 = vld [vmem:[#allocation11 + $0x40] sm:$0xff]
    %v498 = vld [vmem:[#allocation11 + $0x48] sm:$0xff]
    %v499 = vld [vmem:[#allocation11 + $0x50] sm:$0xff]
    %v500 = vld [vmem:[#allocation11 + $0x58] sm:$0xff]
    %v501 = vld [vmem:[#allocation11 + $0x60] sm:$0xff]
    %v502 = vld [vmem:[#allocation11 + $0x68] sm:$0xff]
    %v503 = vld [vmem:[#allocation11 + $0x70] sm:$0xff]
    %v504 = vld [vmem:[#allocation11 + $0x78] sm:$0xff]
    %v505 = vld [vmem:[%s9] sm:$0x1]
    %v507 = vlaneseq
    %v508 = vshrl.u32 %v507, 7
    %v509 = vsub.s32 0, %v508
    %v510 = vrot.slane %v505, %v509
    %512 = vmatprep.subr.mxu0 0.0
    %513 = vmatpush1.msra.mxu0 %v504
    %514 = vmatprep.subr.mxu0 0.0
    %515 = vmatpush1.msra.mxu0 %v503
    %516 = vmatprep.subr.mxu0 0.0
    %517 = vmatpush1.msra.mxu0 %v502
    %518 = vmatprep.subr.mxu0 0.0
    %519 = vmatpush1.msra.mxu0 %v501
    %520 = vmatprep.subr.mxu0 0.0
    %521 = vmatpush1.msra.mxu0 %v500
    %522 = vmatprep.subr.mxu0 0.0
    %523 = vmatpush1.msra.mxu0 %v499
    %524 = vmatprep.subr.mxu0 0.0
    %525 = vmatpush1.msra.mxu0 %v498
    %526 = vmatprep.subr.mxu0 0.0
    %527 = vmatpush1.msra.mxu0 %v497
    %528 = vmatprep.subr.mxu0 0.0
    %529 = vmatpush1.msra.mxu0 %v496
    %530 = vmatprep.subr.mxu0 0.0
    %531 = vmatpush1.msra.mxu0 %v495
    %532 = vmatprep.subr.mxu0 0.0
    %533 = vmatpush1.msra.mxu0 %v494
    %534 = vmatprep.subr.mxu0 0.0
    %535 = vmatpush1.msra.mxu0 %v493
    %536 = vmatprep.subr.mxu0 0.0
    %537 = vmatpush1.msra.mxu0 %v492
    %538 = vmatprep.subr.mxu0 0.0
    %539 = vmatpush1.msra.mxu0 %v491
    %540 = vmatprep.subr.mxu0 0.0
    %541 = vmatpush1.msra.mxu0 %v490
    %542 = vmatprep.subr.mxu0 0.0
    %543 = vmatpush1.msra.mxu0 %v489
    %544 = vmatprep.subr.mxu0 0.0
    %545 = vmatpush2.msra.mxu0 0.0
    %546 = vmatprep.subr.mxu0 0.0
    %547 = vmatpush2.msra.mxu0 0.0
    %548 = vmatprep.subr.mxu0 0.0
    %549 = vmatpush2.msra.mxu0 0.0
    %550 = vmatprep.subr.mxu0 0.0
    %551 = vmatpush2.msra.mxu0 0.0
    %552 = vmatprep.subr.mxu0 0.0
    %553 = vmatpush2.msra.mxu0 0.0
    %554 = vmatprep.subr.mxu0 0.0
    %555 = vmatpush2.msra.mxu0 0.0
    %556 = vmatprep.subr.mxu0 0.0
    %557 = vmatpush2.msra.mxu0 0.0
    %558 = vmatprep.subr.mxu0 0.0
    %559 = vmatpush2.msra.mxu0 0.0
    %560 = vmatprep.subr.mxu0 0.0
    %561 = vmatpush2.msra.mxu0 0.0
    %562 = vmatprep.subr.mxu0 0.0
    %563 = vmatpush2.msra.mxu0 0.0
    %564 = vmatprep.subr.mxu0 0.0
    %565 = vmatpush2.msra.mxu0 0.0
    %566 = vmatprep.subr.mxu0 0.0
    %567 = vmatpush2.msra.mxu0 0.0
    %568 = vmatprep.subr.mxu0 0.0
    %569 = vmatpush2.msra.mxu0 0.0
    %570 = vmatprep.subr.mxu0 0.0
    %571 = vmatpush2.msra.mxu0 0.0
    %572 = vmatprep.subr.mxu0 0.0
    %573 = vmatpush2.msra.mxu0 0.0
    %574 = vmatprep.subr.mxu0 0.0
    %575 = vmatpush2.msra.mxu0 0.0
    %576 = vmatprep.mubr.f32.mxu0 0.0
    %577 = vmatmul.mubr.f32.gmra.mxu0 %v488
    %v578 = vpop.f32.mrf.mxu0
    %v579 = vadd.f32 %v510, %v578
    %v580 = vpop.f32.mrf.mxu0
    %581 = vdwg.mxu0
    %582 = vst [vmem:[#allocation13] sm:$0xff] %v579
    // Predicated region
    $region66: #{tpu_custom_call.1} parent=1 // pred_check
      _
    $region67: #{tpu_custom_call.1} parent=1 // pred_check_branch
      %584 = sbr.rel (0) target = $region69
    $region68: #{tpu_custom_call.1} parent=1 // pred_region
      %s586 = ssub.s32 128, 128
      %587 = vsyncadd [#allocation4], %s586
      %s589 = sshll.u32 [#allocation13], 4
      %s590 = int_to_ptr.vmem [resolvable:$true] %s589
      %592 = dma.vmem_to_hbm [thread:$0]  %s590, 128, %s10, [#allocation4]
    $region69: #{tpu_custom_call.1} parent=1 // pred_fallthru
      _
    // Predicated region
    $region70: #{tpu_custom_call.1} parent=1 // pred_check
      _
    $region71: #{tpu_custom_call.1} parent=1 // pred_check_branch
      %594 = sbr.rel (0) target = $region73
    $region72: #{tpu_custom_call.1} parent=1 // pred_region
      %595 = dma.done [#allocation4], 128
    $region73: #{tpu_custom_call.1} parent=1 // pred_fallthru
      _
    %596 = vsyncpa [#allocation3], 1
    %597 = vsyncpa [#allocation6], 1
    %598 = vsyncpa [#allocation9], 1
    %599 = vsyncpa [#allocation12], 1
    %600 = vsyncpa [#allocation4], 1

</llo_original>
